<compile_context>
chip_gen: v5e
topology: v5e:2x2
jax: 0.10.0
libtpu: 0.0.40
codegen_flags: <defaults>
</compile_context>

<pallas_src>
import functools

import jax
import jax.numpy as jnp
import numpy as np
from jax import lax
from jax.experimental import pallas as pl
from jax.experimental.pallas import tpu as pltpu

LANE = 128
MAX_TILE_ROWS = 4096  # (4096,128) f32 block = 2 MiB; 3 inputs x 2 buffers <= 12 MiB of VMEM I/O


def _sublane_align(*dtypes):
    """Minimum sublane multiple satisfying the TPU (8,128)/(16,128)/(32,128) tile constraint."""
    align = 8
    for dt in dtypes:
        itemsize = jnp.dtype(dt).itemsize
        if itemsize == 2:
            align = max(align, 16)
        elif itemsize == 1:
            align = max(align, 32)
    return align


def _vfl_jnp_sum(p, t, lbl, alpha, gamma):
    """Plain-jnp varifocal partial sum (tiny tails + reference)."""
    p = p.astype(jnp.float32)
    t = t.astype(jnp.float32)
    lbl = lbl.astype(jnp.float32)
    weight = jnp.float32(alpha) * jnp.power(p, jnp.float32(gamma)) * (1.0 - lbl) + t * lbl
    log_p = jnp.maximum(jnp.log(p), -100.0)
    log_1mp = jnp.maximum(jnp.log(1.0 - p), -100.0)
    ce = -(t * log_p + (1.0 - t) * log_1mp)
    return jnp.sum(ce * weight)


def _vfl_kernel(pred_ref, target_ref, label_ref, out_ref, *,
                alpha, gamma, tile_rows, valid_rows, num_blocks):
    # Inputs arrive at their native (possibly narrow) dtype; compute in f32.
    p = pred_ref[...].astype(jnp.float32)
    t = target_ref[...].astype(jnp.float32)
    lbl = label_ref[...].astype(jnp.float32)

    # binary_cross_entropy(p, t, reduction="none"); PyTorch clamps the log terms at -100.
    log_p_raw = jnp.log(p)
    log_p = jnp.maximum(log_p_raw, -100.0)
    log_1mp = jnp.maximum(jnp.log(1.0 - p), -100.0)
    ce = -(t * log_p + (1.0 - t) * log_1mp)

    # weight = alpha * p**gamma * (1 - label) + target * label
    if gamma == 2.0:
        p_pow = p * p
    elif gamma == 1.0:
        p_pow = p
    elif gamma == 0.0:
        p_pow = jnp.ones_like(p)
    else:
        # p**gamma == exp(gamma * log p): reuses the unclamped log already computed for BCE and
        # matches jnp.power at p == 0 for any gamma != 0 (gamma == 0 special-cased above).
        p_pow = jnp.exp(jnp.float32(gamma) * log_p_raw)
    weight = jnp.float32(alpha) * p_pow * (1.0 - lbl) + t * lbl

    prod = ce * weight

    def write_partial(x):
        # Lane-dense (8,128) partial sum: pure VPU vreg adds (reshape aligns to (8,128) tiling).
        out_ref[...] = jnp.sum(x.reshape(tile_rows // 8, 8, LANE), axis=0).reshape(1, 8, LANE)

    last_valid = valid_rows - (num_blocks - 1) * tile_rows  # static Python int
    if last_valid == tile_rows:
        # Every block is full: no masking anywhere.
        write_partial(prod)
    else:
        last = num_blocks - 1

        @pl.when(pl.program_id(0) != last)
        def _():
            write_partial(prod)

        @pl.when(pl.program_id(0) == last)
        def _():
            # The last block's DMA is clamped at the array edge; rows >= last_valid hold stale
            # VMEM data.  Mask with a select (safe even if those rows compute to NaN/inf).
            row_ids = lax.broadcasted_iota(jnp.int32, (tile_rows, LANE), 0)
            write_partial(jnp.where(row_ids < last_valid, prod, 0.0))


def varifocal_loss(pred_score, target_score, label, alpha=0.75, gamma=2.0):
    """Varifocal loss (scalar sum).  Scores may be f32 or bf16, labels f32/int8/bool; narrower
    input dtypes directly reduce HBM traffic of this memory-bound kernel."""
    if label.dtype == jnp.bool_:
        label = label.astype(jnp.int8)  # 1-byte storage, well-supported kernel dtype

    flat_p = pred_score.reshape(-1)
    flat_t = target_score.reshape(-1)
    flat_l = label.reshape(-1)
    n = flat_p.shape[0]

    align = _sublane_align(flat_p.dtype, flat_t.dtype, flat_l.dtype)
    rows = n // LANE

    total = jnp.float32(0.0)
    n_main = 0

    if rows >= align:
        n_main = rows * LANE

        def _prefix_2d(x):
            # Free bitcast reshape when n % 128 == 0 (the common detection-loss case); otherwise a
            # single prefix slice replaces the old full-array jnp.pad copy.
            if n_main != n:
                x = x[:n_main]
            return x.reshape(rows, LANE)

        p2d = _prefix_2d(flat_p)
        t2d = _prefix_2d(flat_t)
        l2d = _prefix_2d(flat_l)

        tile_rows = min(MAX_TILE_ROWS, (rows // align) * align)   # always a multiple of `align`
        num_blocks = pl.cdiv(rows, tile_rows)

        kernel = functools.partial(
            _vfl_kernel,
            alpha=float(alpha),
            gamma=float(gamma),
            tile_rows=tile_rows,
            valid_rows=rows,
            num_blocks=num_blocks,
        )

        in_bytes = n_main * (p2d.dtype.itemsize + t2d.dtype.itemsize + l2d.dtype.itemsize)
        cost = pl.CostEstimate(
            flops=14 * n_main,
            transcendentals=2 * n_main,
            bytes_accessed=in_bytes + num_blocks * 8 * LANE * 4,
        )

        partials = pl.pallas_call(
            kernel,
            out_shape=jax.ShapeDtypeStruct((num_blocks, 8, LANE), jnp.float32),
            grid=(num_blocks,),
            in_specs=[
                pl.BlockSpec((tile_rows, LANE), lambda i: (i, 0)),
                pl.BlockSpec((tile_rows, LANE), lambda i: (i, 0)),
                pl.BlockSpec((tile_rows, LANE), lambda i: (i, 0)),
            ],
            out_specs=pl.BlockSpec((1, 8, LANE), lambda i: (i, 0, 0)),
            compiler_params=pltpu.CompilerParams(
                # Independent per-block partials -> megacore sharding of the 1-D grid on v7x.
                dimension_semantics=("parallel",),
                vmem_limit_bytes=48 * 1024 * 1024,  # 12 MiB I/O buffers + f32 temps, v7x-safe
            ),
            cost_estimate=cost,
        )(p2d, t2d, l2d)

        # Final reduce of a tiny (num_blocks, 8, 128) array.
        total = total + jnp.sum(partials)

    if n_main < n:
        # <128-element lane tail (or an input smaller than one sublane tile of rows): plain jnp.
        total = total + _vfl_jnp_sum(flat_p[n_main:], flat_t[n_main:], flat_l[n_main:],
                                     alpha, gamma)
    return total


def varifocal_loss_ref(pred_score, target_score, label, alpha=0.75, gamma=2.0):
    return _vfl_jnp_sum(pred_score.reshape(-1), target_score.reshape(-1),
                        label.reshape(-1), alpha, gamma)


if __name__ == "__main__":
    loss_fn = jax.jit(varifocal_loss)
    keys = jax.random.split(jax.random.PRNGKey(0), 9)

    # Case 1: f32 inputs, lane-unaligned size (Pallas on 40 aligned rows + tiny jnp lane tail).
    B, N, C = 2, 130, 20            # 5200 elems = 40*128 + 80
    pred1 = jax.nn.sigmoid(jax.random.normal(keys[0], (B, N, C), dtype=jnp.float32))
    label1 = (jax.random.uniform(keys[1], (B, N, C)) > 0.8).astype(jnp.float32)
    target1 = jax.random.uniform(keys[2], (B, N, C), dtype=jnp.float32) * label1

    loss1 = jax.block_until_ready(loss_fn(pred1, target1, label1))
    ref1 = jax.block_until_ready(varifocal_loss_ref(pred1, target1, label1))
    np.testing.assert_allclose(np.asarray(loss1), np.asarray(ref1), rtol=1e-5, atol=1e-4)

    # Case 2: bf16 scores + int8 labels (5 B/elem instead of 12), lane-aligned, multi-block with a
    # ragged masked last block: 3*1400*128 = 537600 elems = 4200 rows -> blocks of 4096 + 104.
    B2, N2, C2 = 3, 1400, 128
    label2 = (jax.random.uniform(keys[3], (B2, N2, C2)) > 0.8).astype(jnp.int8)
    pred2 = jax.nn.sigmoid(
        jax.random.normal(keys[4], (B2, N2, C2), dtype=jnp.float32)).astype(jnp.bfloat16)
    target2 = (jax.random.uniform(keys[5], (B2, N2, C2), dtype=jnp.float32)
               * label2.astype(jnp.float32)).astype(jnp.bfloat16)

    loss2 = jax.block_until_ready(loss_fn(pred2, target2, label2))
    ref2 = jax.block_until_ready(varifocal_loss_ref(pred2, target2, label2))
    np.testing.assert_allclose(np.asarray(loss2), np.asarray(ref2), rtol=5e-4, atol=1e-2)

    # Case 3: tiny input (< one sublane tile of rows) -> pure-jnp fallback path.
    B3, N3, C3 = 2, 3, 4
    pred3 = jax.nn.sigmoid(jax.random.normal(keys[6], (B3, N3, C3), dtype=jnp.float32))
    label3 = (jax.random.uniform(keys[7], (B3, N3, C3)) > 0.5).astype(jnp.float32)
    target3 = jax.random.uniform(keys[8], (B3, N3, C3), dtype=jnp.float32) * label3

    loss3 = jax.block_until_ready(loss_fn(pred3, target3, label3))
    ref3 = jax.block_until_ready(varifocal_loss_ref(pred3, target3, label3))
    np.testing.assert_allclose(np.asarray(loss3), np.asarray(ref3), rtol=1e-5, atol=1e-5)

    print("KERNEL_OK")
</pallas_src>

<mosaic_0001>
module attributes {stable_mosaic.version = 11 : i64} {
  func.func @_vfl_kernel(%arg0: i32, %arg1: memref<40x128xf32, #tpu.memory_space<vmem>>, %arg2: memref<40x128xf32, #tpu.memory_space<vmem>>, %arg3: memref<40x128xf32, #tpu.memory_space<vmem>>, %arg4: memref<1x8x128xf32, #tpu.memory_space<vmem>>) attributes {dimension_semantics = [#tpu.dimension_semantics<parallel>], iteration_bounds = array<i64: 1>, scalar_prefetch = 0 : i64, scratch_operands = 0 : i64, tpu.core_type = #tpu.core_type<tc>, window_params = [{transform_indices = @transform_0, window_bounds = array<i64: 40, 128>}, {transform_indices = @transform_1, window_bounds = array<i64: 40, 128>}, {transform_indices = @transform_2, window_bounds = array<i64: 40, 128>}, {transform_indices = @transform_3, window_bounds = array<i64: 1, 8, 128>}]} {
    %c0 = arith.constant 0 : index
    %c0_0 = arith.constant 0 : index
    %0 = vector.load %arg1[%c0, %c0_0] : memref<40x128xf32, #tpu.memory_space<vmem>>, vector<40x128xf32>
    %c0_1 = arith.constant 0 : index
    %c0_2 = arith.constant 0 : index
    %1 = vector.load %arg2[%c0_1, %c0_2] : memref<40x128xf32, #tpu.memory_space<vmem>>, vector<40x128xf32>
    %c0_3 = arith.constant 0 : index
    %c0_4 = arith.constant 0 : index
    %2 = vector.load %arg3[%c0_3, %c0_4] : memref<40x128xf32, #tpu.memory_space<vmem>>, vector<40x128xf32>
    %3 = math.log %0 : vector<40x128xf32>
    %cst = arith.constant -1.000000e+02 : f32
    %4 = vector.broadcast %cst : f32 to vector<40x128xf32>
    %5 = arith.maximumf %3, %4 : vector<40x128xf32>
    %cst_5 = arith.constant 1.000000e+00 : f32
    %6 = vector.broadcast %cst_5 : f32 to vector<40x128xf32>
    %7 = arith.subf %6, %0 : vector<40x128xf32>
    %8 = math.log %7 : vector<40x128xf32>
    %cst_6 = arith.constant -1.000000e+02 : f32
    %9 = vector.broadcast %cst_6 : f32 to vector<40x128xf32>
    %10 = arith.maximumf %8, %9 : vector<40x128xf32>
    %11 = arith.mulf %1, %5 : vector<40x128xf32>
    %cst_7 = arith.constant 1.000000e+00 : f32
    %12 = vector.broadcast %cst_7 : f32 to vector<40x128xf32>
    %13 = arith.subf %12, %1 : vector<40x128xf32>
    %14 = arith.mulf %13, %10 : vector<40x128xf32>
    %15 = arith.addf %11, %14 : vector<40x128xf32>
    %cst_8 = arith.constant 0.000000e+00 : f32
    %16 = vector.broadcast %cst_8 : f32 to vector<40x128xf32>
    %17 = arith.subf %16, %15 : vector<40x128xf32>
    %18 = arith.mulf %0, %0 : vector<40x128xf32>
    %cst_9 = arith.constant 7.500000e-01 : f32
    %19 = vector.broadcast %cst_9 : f32 to vector<40x128xf32>
    %20 = arith.mulf %19, %18 : vector<40x128xf32>
    %cst_10 = arith.constant 1.000000e+00 : f32
    %21 = vector.broadcast %cst_10 : f32 to vector<40x128xf32>
    %22 = arith.subf %21, %2 : vector<40x128xf32>
    %23 = arith.mulf %20, %22 : vector<40x128xf32>
    %24 = arith.mulf %1, %2 : vector<40x128xf32>
    %25 = arith.addf %23, %24 : vector<40x128xf32>
    %26 = arith.mulf %17, %25 : vector<40x128xf32>
    %27 = vector.shape_cast %26 : vector<40x128xf32> to vector<5x8x128xf32>
    %cst_11 = arith.constant dense<0.000000e+00> : vector<8x128xf32>
    %28 = vector.multi_reduction <add>, %27, %cst_11 [0] : vector<5x8x128xf32> to vector<8x128xf32>
    %29 = vector.shape_cast %28 : vector<8x128xf32> to vector<1x8x128xf32>
    %c0_12 = arith.constant 0 : index
    %c0_13 = arith.constant 0 : index
    %c0_14 = arith.constant 0 : index
    %30 = vector.load %arg4[%c0_12, %c0_13, %c0_14] : memref<1x8x128xf32, #tpu.memory_space<vmem>>, vector<1x8x128xf32>
    tpu.vector_store %arg4[%c0_12, %c0_13, %c0_14], %29 {strides = array<i32>} : memref<1x8x128xf32, #tpu.memory_space<vmem>>, vector<1x8x128xf32>,
    return
  }
  func.func @transform_0(%arg0: i32) -> (i32, i32) {
    %c0_i32 = arith.constant 0 : i32
    %c0_i32_0 = arith.constant 0 : i32
    return %arg0, %c0_i32 : i32, i32
  }
  func.func @transform_1(%arg0: i32) -> (i32, i32) {
    %c0_i32 = arith.constant 0 : i32
    %c0_i32_0 = arith.constant 0 : i32
    return %arg0, %c0_i32 : i32, i32
  }
  func.func @transform_2(%arg0: i32) -> (i32, i32) {
    %c0_i32 = arith.constant 0 : i32
    %c0_i32_0 = arith.constant 0 : i32
    return %arg0, %c0_i32 : i32, i32
  }
  func.func @transform_3(%arg0: i32) -> (i32, i32, i32) {
    %c0_i32 = arith.constant 0 : i32
    %c0_i32_0 = arith.constant 0 : i32
    %c0_i32_1 = arith.constant 0 : i32
    return %arg0, %c0_i32, %c0_i32_0 : i32, i32, i32
  }
}

</mosaic_0001>

<llo_original>
// kernel: varifocal_loss.1
$region0: #{varifocal_loss.1}
  #allocation0 [shape = 'u32[]', space=smem, size = 0x4, offset = 0x4, fixed_abs, tag = 'smem constant byte address 0x4 - core index']
  #allocation1 [shape = 'u32[72,128]{1,0:T(1,128)}', space=vmem, size = 0x9000, scoped, tag = 'internal scratch']
  %s0 = inlined_call_operand.vmem [shape: f32[40,128], index: 0, kind: input, shape index: {}]
  %s1 = inlined_call_operand.vmem [shape: f32[40,128], index: 1, kind: input, shape index: {}]
  %s2 = inlined_call_operand.vmem [shape: f32[40,128], index: 2, kind: input, shape index: {}]
  %s3 = inlined_call_operand.vmem [shape: f32[1,8,128], index: 3, kind: output, shape index: {}]
  %s4 = sld [smem:[#allocation0]]
  $region22: #{varifocal_loss.1} parent=0
    _
  %s6 = ssub.s32 1, %s4
  %s7 = scalar_select 0, %s6, %s4
  // Predicated region
  $region2: #{varifocal_loss.1} parent=0 // pred_check
    _
  $region3: #{varifocal_loss.1} parent=0 // pred_check_branch
    %9 = sbr.rel (0) target = $region5
  $region4: #{varifocal_loss.1} parent=0 // pred_region
    _
  $region5: #{varifocal_loss.1} parent=0 // pred_fallthru
    _
  // Predicated region
  $region6: #{varifocal_loss.1} parent=0 // pred_check
    _
  $region7: #{varifocal_loss.1} parent=0 // pred_check_branch
    %11 = sbr.rel (0) target = $region9
  $region8: #{varifocal_loss.1} parent=0 // pred_region
    _
  $region9: #{varifocal_loss.1} parent=0 // pred_fallthru
    _
  // Predicated region
  $region10: #{varifocal_loss.1} parent=0 // pred_check
    _
  $region11: #{varifocal_loss.1} parent=0 // pred_check_branch
    %13 = sbr.rel (0) target = $region13
  $region12: #{varifocal_loss.1} parent=0 // pred_region
    _
  $region13: #{varifocal_loss.1} parent=0 // pred_fallthru
    _
  %v14 = vld [vmem:[%s0] sm:$0xff]
  %v15 = vld [vmem:[%s0 + $0x8] sm:$0xff]
  %v16 = vld [vmem:[%s0 + $0x10] sm:$0xff]
  %v17 = vld [vmem:[%s0 + $0x18] sm:$0xff]
  %v18 = vld [vmem:[%s0 + $0x20] sm:$0xff]
  %v19 = vld [vmem:[%s1] sm:$0xff]
  %v20 = vld [vmem:[%s1 + $0x8] sm:$0xff]
  %v21 = vld [vmem:[%s1 + $0x10] sm:$0xff]
  %v22 = vld [vmem:[%s1 + $0x18] sm:$0xff]
  %v23 = vld [vmem:[%s1 + $0x20] sm:$0xff]
  %v24 = vld [vmem:[%s2] sm:$0xff]
  %v25 = vld [vmem:[%s2 + $0x8] sm:$0xff]
  %v26 = vld [vmem:[%s2 + $0x10] sm:$0xff]
  %v27 = vld [vmem:[%s2 + $0x18] sm:$0xff]
  %v28 = vld [vmem:[%s2 + $0x20] sm:$0xff]
  %v29 = vlog2.pop %v14
  %v30 = vmul.f32 %v29, 0.6931472
  %v31 = vlog2.pop %v15
  %v32 = vmul.f32 %v31, 0.6931472
  %v33 = vlog2.pop %v16
  %v34 = vmul.f32 %v33, 0.6931472
  %v35 = vlog2.pop %v17
  %v36 = vmul.f32 %v35, 0.6931472
  %v37 = vlog2.pop %v18
  %v38 = vmul.f32 %v37, 0.6931472
  %v39 = vmax.f32 %v30, -100.0
  %v40 = vmax.f32 %v32, -100.0
  %v41 = vmax.f32 %v34, -100.0
  %v42 = vmax.f32 %v36, -100.0
  %v43 = vmax.f32 %v38, -100.0
  %v44 = vsub.f32 1.0, %v14
  %v45 = vsub.f32 1.0, %v15
  %v46 = vsub.f32 1.0, %v16
  %v47 = vsub.f32 1.0, %v17
  %v48 = vsub.f32 1.0, %v18
  %v49 = vlog2.pop %v44
  %v50 = vmul.f32 %v49, 0.6931472
  %v51 = vlog2.pop %v45
  %v52 = vmul.f32 %v51, 0.6931472
  %v53 = vlog2.pop %v46
  %v54 = vmul.f32 %v53, 0.6931472
  %v55 = vlog2.pop %v47
  %v56 = vmul.f32 %v55, 0.6931472
  %v57 = vlog2.pop %v48
  %v58 = vmul.f32 %v57, 0.6931472
  %v59 = vmax.f32 %v50, -100.0
  %v60 = vmax.f32 %v52, -100.0
  %v61 = vmax.f32 %v54, -100.0
  %v62 = vmax.f32 %v56, -100.0
  %v63 = vmax.f32 %v58, -100.0
  %v64 = vmul.f32 %v19, %v39
  %v65 = vmul.f32 %v20, %v40
  %v66 = vmul.f32 %v21, %v41
  %v67 = vmul.f32 %v22, %v42
  %v68 = vmul.f32 %v23, %v43
  %v69 = vsub.f32 1.0, %v19
  %v70 = vsub.f32 1.0, %v20
  %v71 = vsub.f32 1.0, %v21
  %v72 = vsub.f32 1.0, %v22
  %v73 = vsub.f32 1.0, %v23
  %v74 = vmul.f32 %v69, %v59
  %v75 = vmul.f32 %v70, %v60
  %v76 = vmul.f32 %v71, %v61
  %v77 = vmul.f32 %v72, %v62
  %v78 = vmul.f32 %v73, %v63
  %v79 = vadd.f32 %v64, %v74
  %v80 = vadd.f32 %v65, %v75
  %v81 = vadd.f32 %v66, %v76
  %v82 = vadd.f32 %v67, %v77
  %v83 = vadd.f32 %v68, %v78
  %v84 = vsub.f32 0.0, %v79
  %v85 = vsub.f32 0.0, %v80
  %v86 = vsub.f32 0.0, %v81
  %v87 = vsub.f32 0.0, %v82
  %v88 = vsub.f32 0.0, %v83
  %v89 = vmul.f32 %v14, %v14
  %v90 = vmul.f32 %v15, %v15
  %v91 = vmul.f32 %v16, %v16
  %v92 = vmul.f32 %v17, %v17
  %v93 = vmul.f32 %v18, %v18
  %v94 = vmul.f32 %v89, 0.75
  %v95 = vmul.f32 %v90, 0.75
  %v96 = vmul.f32 %v91, 0.75
  %v97 = vmul.f32 %v92, 0.75
  %v98 = vmul.f32 %v93, 0.75
  %v99 = vsub.f32 1.0, %v24
  %v100 = vsub.f32 1.0, %v25
  %v101 = vsub.f32 1.0, %v26
  %v102 = vsub.f32 1.0, %v27
  %v103 = vsub.f32 1.0, %v28
  %v104 = vmul.f32 %v94, %v99
  %v105 = vmul.f32 %v95, %v100
  %v106 = vmul.f32 %v96, %v101
  %v107 = vmul.f32 %v97, %v102
  %v108 = vmul.f32 %v98, %v103
  %v109 = vmul.f32 %v19, %v24
  %v110 = vmul.f32 %v20, %v25
  %v111 = vmul.f32 %v21, %v26
  %v112 = vmul.f32 %v22, %v27
  %v113 = vmul.f32 %v23, %v28
  %v114 = vadd.f32 %v104, %v109
  %v115 = vadd.f32 %v105, %v110
  %v116 = vadd.f32 %v106, %v111
  %v117 = vadd.f32 %v107, %v112
  %v118 = vadd.f32 %v108, %v113
  %v119 = vmul.f32 %v84, %v114
  %v120 = vmul.f32 %v85, %v115
  %v121 = vmul.f32 %v86, %v116
  %v122 = vmul.f32 %v87, %v117
  %v123 = vmul.f32 %v88, %v118
  %v124 = vadd.f32 %v119, %v120
  %v125 = vadd.f32 %v124, %v121
  %v126 = vadd.f32 %v125, %v122
  %v127 = vadd.f32 %v126, %v123
  %128 = vst [vmem:[%s3] sm:$0xff] %v127
  // Predicated region
  $region14: #{varifocal_loss.1} parent=0 // pred_check
    _
  $region15: #{varifocal_loss.1} parent=0 // pred_check_branch
    %130 = sbr.rel (0) target = $region17
  $region16: #{varifocal_loss.1} parent=0 // pred_region
    _
  $region17: #{varifocal_loss.1} parent=0 // pred_fallthru
    _
  // Predicated region
  $region18: #{varifocal_loss.1} parent=0 // pred_check
    _
  $region19: #{varifocal_loss.1} parent=0 // pred_check_branch
    %132 = sbr.rel (0) target = $region21
  $region20: #{varifocal_loss.1} parent=0 // pred_region
    _
  $region21: #{varifocal_loss.1} parent=0 // pred_fallthru
    _

</llo_original>
